<compile_context>
chip_gen: v7x
topology: tpu7x:2x2x1
jax: 0.10.0
libtpu: 0.0.40
codegen_flags: <defaults>
</compile_context>

<pallas_src>
import math

import jax
import jax.numpy as jnp
from jax.experimental import pallas as pl
from jax.experimental.pallas import tpu as pltpu

EMB_DIM = 300   # fixed by the module
_SUBLANE = 8    # sublane width (second-to-last-dim block alignment)


def _round_up(v, m):
    return (v + m - 1) // m * m


def _linear_kernel(x_ref, w_ref, b_ref, o_ref):
    # x_ref: (tm, K), w_ref: (K, N), b_ref: (1, N), o_ref: (tm, N)
    acc = jnp.dot(x_ref[...], w_ref[...], preferred_element_type=jnp.float32)
    o_ref[...] = (acc + b_ref[...]).astype(o_ref.dtype)


def encoder_forward(x, weight, bias, *, tm=None):
    """Pallas Encoder forward.

    x:      (M, EMB_DIM) float32
    weight: (EMB_DIM, bottleneck_dim) float32   (transpose of torch layout)
    bias:   (bottleneck_dim,) float32
    returns (M, bottleneck_dim) float32
    """
    M, K = x.shape
    assert K == EMB_DIM
    Kw, N = weight.shape
    assert Kw == K
    assert bias.shape == (N,)

    # Tile selection:
    #   * big tiles amortize per-grid-step overhead (~0.35us),
    #   * but keep >= 2 (roughly even) grid steps when there is enough work so
    #     the "parallel" grid axis can be split across both TCs on v7x.
    if tm is None:
        tm = 1024
        if M > 2 * _SUBLANE:
            tm = min(tm, _round_up(pl.cdiv(M, 2), _SUBLANE))
    tm = max(_SUBLANE, _round_up(tm, _SUBLANE))
    tm = min(tm, _round_up(M, _SUBLANE))     # never larger than the (rounded) batch

    grid = (pl.cdiv(M, tm),)

    b2d = bias.reshape(1, N)

    bytes_accessed = 4 * (M * K + K * N + N + M * N)

    # TODO(synk): if the upstream producer can emit x (and weight) in bf16, feed
    # bf16 here with f32 accumulation for ~2x less HBM read traffic; a standalone
    # cast at this boundary would itself cost an extra HBM pass, so it is not done here.
    out = pl.pallas_call(
        _linear_kernel,
        out_shape=jax.ShapeDtypeStruct((M, N), x.dtype),
        grid=grid,
        in_specs=[
            pl.BlockSpec((tm, K), lambda i: (i, 0)),   # x tile (streamed, contiguous)
            pl.BlockSpec((K, N), lambda i: (0, 0)),    # full weight (resident)
            pl.BlockSpec((1, N), lambda i: (0, 0)),    # bias row (resident)
        ],
        out_specs=pl.BlockSpec((tm, N), lambda i: (i, 0)),
        compiler_params=pltpu.CompilerParams(
            dimension_semantics=("parallel",),
        ),
        cost_estimate=pl.CostEstimate(
            flops=2 * M * K * N,
            transcendentals=0,
            bytes_accessed=bytes_accessed,
        ),
    )(x, weight, b2d)

    return out


def init_encoder_params(key, bottleneck_dim):
    """Deterministic init matching nn.Linear's default (uniform +- 1/sqrt(fan_in))."""
    kw, kb = jax.random.split(key)
    bound = 1.0 / math.sqrt(EMB_DIM)
    # stored as (in, out) == transpose of torch's (out, in)
    weight = jax.random.uniform(
        kw, (EMB_DIM, bottleneck_dim), jnp.float32, minval=-bound, maxval=bound
    )
    bias = jax.random.uniform(
        kb, (bottleneck_dim,), jnp.float32, minval=-bound, maxval=bound
    )
    return weight, bias


if __name__ == "__main__":
    key = jax.random.PRNGKey(0)
    k_x, k_p = jax.random.split(key)

    batch = 8
    bottleneck_dim = 32

    x = jax.random.normal(k_x, (batch, EMB_DIM), dtype=jnp.float32)
    weight, bias = init_encoder_params(k_p, bottleneck_dim)

    out = jax.block_until_ready(encoder_forward(x, weight, bias))
    ref = x @ weight + bias[None, :]
    assert out.shape == (batch, bottleneck_dim)
    assert jnp.allclose(out, ref, atol=1e-4, rtol=1e-4)

    # batch not a multiple of the sublane width -> exercises the partial tile path
    x2 = jax.random.normal(k_x, (13, EMB_DIM), dtype=jnp.float32)
    out2 = jax.block_until_ready(encoder_forward(x2, weight, bias))
    ref2 = x2 @ weight + bias[None, :]
    assert out2.shape == (13, bottleneck_dim)
    assert jnp.allclose(out2, ref2, atol=1e-4, rtol=1e-4)

    # larger batch -> multiple grid steps (megacore path on v7x)
    x3 = jax.random.normal(k_x, (2000, EMB_DIM), dtype=jnp.float32)
    out3 = jax.block_until_ready(encoder_forward(x3, weight, bias))
    ref3 = x3 @ weight + bias[None, :]
    assert out3.shape == (2000, bottleneck_dim)
    assert jnp.allclose(out3, ref3, atol=1e-4, rtol=1e-4)

    print("KERNEL_OK")
</pallas_src>

<mosaic_0001>
module attributes {stable_mosaic.version = 11 : i64} {
  func.func @_linear_kernel(%arg0: i32, %arg1: memref<8x300xf32, #tpu.memory_space<vmem>>, %arg2: memref<300x32xf32, #tpu.memory_space<vmem>>, %arg3: memref<1x32xf32, #tpu.memory_space<vmem>>, %arg4: memref<8x32xf32, #tpu.memory_space<vmem>>) attributes {dimension_semantics = [#tpu.dimension_semantics<parallel>], iteration_bounds = array<i64: 1>, scalar_prefetch = 0 : i64, scratch_operands = 0 : i64, tpu.core_type = #tpu.core_type<tc>, window_params = [{transform_indices = @transform_0, window_bounds = array<i64: 8, 300>}, {pipeline_mode = #tpu.pipeline_mode<synchronous>, transform_indices = @transform_1, window_bounds = array<i64: 300, 32>}, {pipeline_mode = #tpu.pipeline_mode<synchronous>, transform_indices = @transform_2, window_bounds = array<i64: 1, 32>}, {transform_indices = @transform_3, window_bounds = array<i64: 8, 32>}]} {
    %c0 = arith.constant 0 : index
    %c0_0 = arith.constant 0 : index
    %0 = vector.load %arg1[%c0, %c0_0] : memref<8x300xf32, #tpu.memory_space<vmem>>, vector<8x300xf32>
    %c0_1 = arith.constant 0 : index
    %c0_2 = arith.constant 0 : index
    %1 = vector.load %arg2[%c0_1, %c0_2] : memref<300x32xf32, #tpu.memory_space<vmem>>, vector<300x32xf32>
    %cst = arith.constant dense<0.000000e+00> : vector<8x32xf32>
    %2 = tpu.matmul %0, %1, %cst {dimension_numbers = #tpu.dot_dimension_numbers<[1], [0], [0], [1], [0, 0, 1, 1], [], []>} : vector<8x300xf32>, vector<300x32xf32>, vector<8x32xf32> -> vector<8x32xf32>
    %c0_3 = arith.constant 0 : index
    %c0_4 = arith.constant 0 : index
    %3 = vector.load %arg3[%c0_3, %c0_4] : memref<1x32xf32, #tpu.memory_space<vmem>>, vector<1x32xf32>
    %4 = vector.broadcast %3 : vector<1x32xf32> to vector<8x32xf32>
    %5 = arith.addf %2, %4 : vector<8x32xf32>
    %c0_5 = arith.constant 0 : index
    %c0_6 = arith.constant 0 : index
    %6 = vector.load %arg4[%c0_5, %c0_6] : memref<8x32xf32, #tpu.memory_space<vmem>>, vector<8x32xf32>
    tpu.vector_store %arg4[%c0_5, %c0_6], %5 {strides = array<i32>} : memref<8x32xf32, #tpu.memory_space<vmem>>, vector<8x32xf32>,
    return
  }
  func.func @transform_0(%arg0: i32) -> (i32, i32) {
    %c0_i32 = arith.constant 0 : i32
    %c0_i32_0 = arith.constant 0 : i32
    return %arg0, %c0_i32 : i32, i32
  }
  func.func @transform_1(%arg0: i32) -> (i32, i32) {
    %c0_i32 = arith.constant 0 : i32
    %c0_i32_0 = arith.constant 0 : i32
    %c0_i32_1 = arith.constant 0 : i32
    return %c0_i32, %c0_i32_0 : i32, i32
  }
  func.func @transform_2(%arg0: i32) -> (i32, i32) {
    %c0_i32 = arith.constant 0 : i32
    %c0_i32_0 = arith.constant 0 : i32
    %c0_i32_1 = arith.constant 0 : i32
    return %c0_i32, %c0_i32_0 : i32, i32
  }
  func.func @transform_3(%arg0: i32) -> (i32, i32) {
    %c0_i32 = arith.constant 0 : i32
    %c0_i32_0 = arith.constant 0 : i32
    return %arg0, %c0_i32 : i32, i32
  }
}

</mosaic_0001>

<llo_original>
// kernel: tpu_custom_call.1
$region0: #{tpu_custom_call.1}
  #allocation0 [shape = 'u32[]', space=smem, size = 0x4, offset = 0x4, fixed_abs, tag = 'smem constant byte address 0x4 - core index']
  #allocation1 [shape = 'u32[144,128]{1,0:T(1,128)}', space=vmem, size = 0x12000, scoped, tag = 'internal scratch']
  %s0 = inlined_call_operand.vmem [shape: f32[8,300], index: 0, kind: input, shape index: {}]
  %s1 = inlined_call_operand.vmem [shape: f32[300,32], index: 1, kind: input, shape index: {}]
  %s2 = inlined_call_operand.vmem [shape: f32[1,32], index: 2, kind: input, shape index: {}]
  %s3 = inlined_call_operand.hbm [shape: f32[8,32], index: 3, kind: output, shape index: {}]
  %s4 = sld [smem:[#allocation0]]
  $region22: #{tpu_custom_call.1} parent=0
    _
  %s6 = ssub.s32 1, %s4
  %s7 = scalar_select 0, %s6, %s4
  $region1: #{tpu_custom_call.1} parent=0
    #allocation2 [shape = 'u8[4096]{0}', space=vmem, size = 0x1000, scoped, tag = 'output window, operand 0, single buffered']
    #allocation3 [shape = 's32[1]{0}', space=sflag, size = 0x4, scoped, tag = 'scoped memory for tpu_custom_call.1']
    %8 = vsyncpa [#allocation3], 0
    // Predicated region
    $region2: #{tpu_custom_call.1} parent=1 // pred_check
      _
    $region3: #{tpu_custom_call.1} parent=1 // pred_check_branch
      %10 = sbr.rel (0) target = $region5
    $region4: #{tpu_custom_call.1} parent=1 // pred_region
      _
    $region5: #{tpu_custom_call.1} parent=1 // pred_fallthru
      _
    // Predicated region
    $region6: #{tpu_custom_call.1} parent=1 // pred_check
      _
    $region7: #{tpu_custom_call.1} parent=1 // pred_check_branch
      %12 = sbr.rel (0) target = $region9
    $region8: #{tpu_custom_call.1} parent=1 // pred_region
      _
    $region9: #{tpu_custom_call.1} parent=1 // pred_fallthru
      _
    // Predicated region
    $region10: #{tpu_custom_call.1} parent=1 // pred_check
      _
    $region11: #{tpu_custom_call.1} parent=1 // pred_check_branch
      %14 = sbr.rel (0) target = $region13
    $region12: #{tpu_custom_call.1} parent=1 // pred_region
      _
    $region13: #{tpu_custom_call.1} parent=1 // pred_fallthru
      _
    %v15 = vld [vmem:[%s0] sm:$0xff]
    %v16 = vld [vmem:[%s0 + $0x8] sm:$0xff]
    %v17 = vld [vmem:[%s0 + $0x10] sm:$0xff]
    %v18 = vld [vmem:[%s1] sm:$0xff]
    %v19 = vld [vmem:[%s1 + $0x8] sm:$0xff]
    %v20 = vld [vmem:[%s1 + $0x10] sm:$0xff]
    %v21 = vld [vmem:[%s1 + $0x18] sm:$0xff]
    %v22 = vld [vmem:[%s1 + $0x20] sm:$0xff]
    %v23 = vld [vmem:[%s1 + $0x28] sm:$0xff]
    %v24 = vld [vmem:[%s1 + $0x30] sm:$0xff]
    %v25 = vld [vmem:[%s1 + $0x38] sm:$0xff]
    %v26 = vld [vmem:[%s1 + $0x40] sm:$0xff]
    %v27 = vld [vmem:[%s1 + $0x48] sm:$0xff]
    %v28 = vld [vmem:[%s1 + $0x50] sm:$0xff]
    %v29 = vld [vmem:[%s1 + $0x58] sm:$0xff]
    %v30 = vld [vmem:[%s1 + $0x60] sm:$0xff]
    %v31 = vld [vmem:[%s1 + $0x68] sm:$0xff]
    %v32 = vld [vmem:[%s1 + $0x70] sm:$0xff]
    %v33 = vld [vmem:[%s1 + $0x78] sm:$0xff]
    %v34 = vld [vmem:[%s1 + $0x80] sm:$0xff]
    %v35 = vld [vmem:[%s1 + $0x88] sm:$0xff]
    %v36 = vld [vmem:[%s1 + $0x90] sm:$0xff]
    %v37 = vld [vmem:[%s1 + $0x98] sm:$0xff]
    %v38 = vld [vmem:[%s1 + $0xa0] sm:$0xff]
    %v39 = vld [vmem:[%s1 + $0xa8] sm:$0xff]
    %v40 = vld [vmem:[%s1 + $0xb0] sm:$0xff]
    %v41 = vld [vmem:[%s1 + $0xb8] sm:$0xff]
    %v42 = vld [vmem:[%s1 + $0xc0] sm:$0xff]
    %v43 = vld [vmem:[%s1 + $0xc8] sm:$0xff]
    %v44 = vld [vmem:[%s1 + $0xd0] sm:$0xff]
    %v45 = vld [vmem:[%s1 + $0xd8] sm:$0xff]
    %v46 = vld [vmem:[%s1 + $0xe0] sm:$0xff]
    %v47 = vld [vmem:[%s1 + $0xe8] sm:$0xff]
    %v48 = vld [vmem:[%s1 + $0xf0] sm:$0xff]
    %v49 = vld [vmem:[%s1 + $0xf8] sm:$0xff]
    %v50 = vld [vmem:[%s1 + $0x100] sm:$0xff]
    %v51 = vld [vmem:[%s1 + $0x108] sm:$0xff]
    %v52 = vld [vmem:[%s1 + $0x110] sm:$0xff]
    %v53 = vld [vmem:[%s1 + $0x118] sm:$0xff]
    %v54 = vld [vmem:[%s1 + $0x120] sm:$0xff]
    %v55 = vld [vmem:[%s1 + $0x128] sm:$0xf]
    %v56 = vld [vmem:[%s2] sm:$0x1]
    %v58 = vlaneseq
    %v59 = vshrl.u32 %v58, 7
    %v60 = vsub.s32 0, %v59
    %v61 = vrot.slane %v56, %v60
    %vm63 = vcmask 359424
    %v65 = vsel %vm63, %v17, 0
    %vm67 = vcmask 1043456
    %v69 = vsel %vm67, %v55, 0
    %71 = vmatprep.subr.mxu0 0.0
    %72 = vmatpush1.msra.mxu0 %v18
    %73 = vmatprep.subr.mxu0 0.0
    %74 = vmatpush1.msra.mxu0 %v19
    %75 = vmatprep.subr.mxu0 0.0
    %76 = vmatpush1.msra.mxu0 %v20
    %77 = vmatprep.subr.mxu0 0.0
    %78 = vmatpush1.msra.mxu0 %v21
    %79 = vmatprep.subr.mxu0 0.0
    %80 = vmatpush1.msra.mxu0 %v22
    %81 = vmatprep.subr.mxu0 0.0
    %82 = vmatpush1.msra.mxu0 %v23
    %83 = vmatprep.subr.mxu0 0.0
    %84 = vmatpush1.msra.mxu0 %v24
    %85 = vmatprep.subr.mxu0 0.0
    %86 = vmatpush1.msra.mxu0 %v25
    %87 = vmatprep.subr.mxu0 0.0
    %88 = vmatpush1.msra.mxu0 %v26
    %89 = vmatprep.subr.mxu0 0.0
    %90 = vmatpush1.msra.mxu0 %v27
    %91 = vmatprep.subr.mxu0 0.0
    %92 = vmatpush1.msra.mxu0 %v28
    %93 = vmatprep.subr.mxu0 0.0
    %94 = vmatpush1.msra.mxu0 %v29
    %95 = vmatprep.subr.mxu0 0.0
    %96 = vmatpush1.msra.mxu0 %v30
    %97 = vmatprep.subr.mxu0 0.0
    %98 = vmatpush1.msra.mxu0 %v31
    %99 = vmatprep.subr.mxu0 0.0
    %100 = vmatpush1.msra.mxu0 %v32
    %101 = vmatprep.subr.mxu0 0.0
    %102 = vmatpush1.msra.mxu0 %v33
    %103 = vmatprep.subr.mxu0 0.0
    %104 = vmatpush1.msra.mxu0 %v34
    %105 = vmatprep.subr.mxu0 0.0
    %106 = vmatpush1.msra.mxu0 %v35
    %107 = vmatprep.subr.mxu0 0.0
    %108 = vmatpush1.msra.mxu0 %v36
    %109 = vmatprep.subr.mxu0 0.0
    %110 = vmatpush1.msra.mxu0 %v37
    %111 = vmatprep.subr.mxu0 0.0
    %112 = vmatpush1.msra.mxu0 %v38
    %113 = vmatprep.subr.mxu0 0.0
    %114 = vmatpush1.msra.mxu0 %v39
    %115 = vmatprep.subr.mxu0 0.0
    %116 = vmatpush1.msra.mxu0 %v40
    %117 = vmatprep.subr.mxu0 0.0
    %118 = vmatpush1.msra.mxu0 %v41
    %119 = vmatprep.subr.mxu0 0.0
    %120 = vmatpush1.msra.mxu0 %v42
    %121 = vmatprep.subr.mxu0 0.0
    %122 = vmatpush1.msra.mxu0 %v43
    %123 = vmatprep.subr.mxu0 0.0
    %124 = vmatpush1.msra.mxu0 %v44
    %125 = vmatprep.subr.mxu0 0.0
    %126 = vmatpush1.msra.mxu0 %v45
    %127 = vmatprep.subr.mxu0 0.0
    %128 = vmatpush1.msra.mxu0 %v46
    %129 = vmatprep.subr.mxu0 0.0
    %130 = vmatpush1.msra.mxu0 %v47
    %131 = vmatprep.subr.mxu0 0.0
    %132 = vmatpush1.msra.mxu0 %v48
    %133 = vmatprep.subr.mxu0 0.0
    %134 = vmatpush1.msra.mxu0 %v49
    %135 = vmatprep.mubr.f32.mxu0 %v16
    %136 = vmatmul.mubr.f32.gmra.mrb[0].mxu0 %v15
    %v137 = vpop.f32.mrb[0].mxu0
    %v138 = vadd.f32 %v61, %v137
    %v139 = vpop.f32.mrb[0].mxu0
    %140 = vdwg.mxu0
    %141 = vmatprep.subr.mxu0 0.0
    %142 = vmatpush1.msra.mxu0 %v50
    %143 = vmatprep.subr.mxu0 0.0
    %144 = vmatpush1.msra.mxu0 %v51
    %145 = vmatprep.subr.mxu0 0.0
    %146 = vmatpush1.msra.mxu0 %v52
    %147 = vmatprep.subr.mxu0 0.0
    %148 = vmatpush1.msra.mxu0 %v53
    %149 = vmatprep.subr.mxu0 0.0
    %150 = vmatpush1.msra.mxu0 %v54
    %151 = vmatprep.subr.mxu0 0.0
    %152 = vmatpush1.msra.mxu0 %v69
    %153 = vmatprep.subr.mxu0 0.0
    %154 = vmatpush1.msra.mxu0 0.0
    %155 = vmatprep.subr.mxu0 0.0
    %156 = vmatpush1.msra.mxu0 0.0
    %157 = vmatprep.subr.mxu0 0.0
    %158 = vmatpush1.msra.mxu0 0.0
    %159 = vmatprep.subr.mxu0 0.0
    %160 = vmatpush1.msra.mxu0 0.0
    %161 = vmatprep.subr.mxu0 0.0
    %162 = vmatpush1.msra.mxu0 0.0
    %163 = vmatprep.subr.mxu0 0.0
    %164 = vmatpush1.msra.mxu0 0.0
    %165 = vmatprep.subr.mxu0 0.0
    %166 = vmatpush1.msra.mxu0 0.0
    %167 = vmatprep.subr.mxu0 0.0
    %168 = vmatpush1.msra.mxu0 0.0
    %169 = vmatprep.subr.mxu0 0.0
    %170 = vmatpush1.msra.mxu0 0.0
    %171 = vmatprep.subr.mxu0 0.0
    %172 = vmatpush1.msra.mxu0 0.0
    %173 = vmatprep.subr.mxu0 0.0
    %174 = vmatpush1.msra.mxu0 0.0
    %175 = vmatprep.subr.mxu0 0.0
    %176 = vmatpush1.msra.mxu0 0.0
    %177 = vmatprep.subr.mxu0 0.0
    %178 = vmatpush1.msra.mxu0 0.0
    %179 = vmatprep.subr.mxu0 0.0
    %180 = vmatpush1.msra.mxu0 0.0
    %181 = vmatprep.subr.mxu0 0.0
    %182 = vmatpush1.msra.mxu0 0.0
    %183 = vmatprep.subr.mxu0 0.0
    %184 = vmatpush1.msra.mxu0 0.0
    %185 = vmatprep.subr.mxu0 0.0
    %186 = vmatpush1.msra.mxu0 0.0
    %187 = vmatprep.subr.mxu0 0.0
    %188 = vmatpush1.msra.mxu0 0.0
    %189 = vmatprep.subr.mxu0 0.0
    %190 = vmatpush1.msra.mxu0 0.0
    %191 = vmatprep.subr.mxu0 0.0
    %192 = vmatpush1.msra.mxu0 0.0
    %193 = vmatprep.subr.mxu0 0.0
    %194 = vmatpush1.msra.mxu0 0.0
    %195 = vmatprep.subr.mxu0 0.0
    %196 = vmatpush1.msra.mxu0 0.0
    %197 = vmatprep.subr.mxu0 0.0
    %198 = vmatpush1.msra.mxu0 0.0
    %199 = vmatprep.subr.mxu0 0.0
    %200 = vmatpush1.msra.mxu0 0.0
    %201 = vmatprep.subr.mxu0 0.0
    %202 = vmatpush1.msra.mxu0 0.0
    %203 = vmatprep.subr.mxu0 0.0
    %204 = vmatpush1.msra.mxu0 0.0
    %205 = vmatprep.mubr.f32.mxu0 0.0
    %206 = vmatmul.mubr.f32.gmra.mrb[0].mxu0 %v65
    %v207 = vpop.f32.mrb[0].mxu0
    %v208 = vadd.f32 %v138, %v207
    %v209 = vpop.f32.mrb[0].mxu0
    %210 = vdwg.mxu0
    %vm211 = vcmask 261120
    %212 = vst.msk [vmem:[#allocation2] sm:$0xff] %vm211, %v208
    // Predicated region
    $region14: #{tpu_custom_call.1} parent=1 // pred_check
      _
    $region15: #{tpu_custom_call.1} parent=1 // pred_check_branch
      %214 = sbr.rel (0) target = $region17
    $region16: #{tpu_custom_call.1} parent=1 // pred_region
      %s216 = ssub.s32 128, 128
      %217 = vsyncadd [#allocation3], %s216
      %s219 = sshll.u32 [#allocation2], 4
      %s220 = int_to_ptr.vmem [resolvable:$true] %s219
      %222 = dma.vmem_to_hbm [thread:$0]  %s220, 128, %s3, [#allocation3]
    $region17: #{tpu_custom_call.1} parent=1 // pred_fallthru
      _
    // Predicated region
    $region18: #{tpu_custom_call.1} parent=1 // pred_check
      _
    $region19: #{tpu_custom_call.1} parent=1 // pred_check_branch
      %224 = sbr.rel (0) target = $region21
    $region20: #{tpu_custom_call.1} parent=1 // pred_region
      %225 = dma.done [#allocation3], 128
    $region21: #{tpu_custom_call.1} parent=1 // pred_fallthru
      _
    %226 = vsyncpa [#allocation3], 1

</llo_original>
